<compile_context>
chip_gen: v7x
topology: tpu7x:2x2x1
jax: 0.10.0
libtpu: 0.0.40
codegen_flags: <defaults>
</compile_context>

<pallas_src>
import functools

import jax
import jax.numpy as jnp
from jax.experimental import pallas as pl
from jax.experimental.pallas import tpu as pltpu


# ------------------------------------------------------------------
# Kernel
# ------------------------------------------------------------------
def _fused_backbone_kernel(n_shared, n_extra, num_heads,
                           shared_relu, head_relu, d_head0_out, *refs):
    """Fused shared-backbone + all-heads MLP over one batch tile.

    refs = (x_ref,
            sw0, sb0, ..., sw{n_shared-1}, sb{n_shared-1},   # shared params
            hw0p, hb0p,                                       # fused first head layer
            hw1, hb1, ..., hw{n_extra}, hb{n_extra},          # remaining stacked head layers
            o_ref)
      x_ref : (TILE_B, d_in)
      swl   : (d_in_l, d_out_l)              sbl : (1, d_out_l)
      hw0p  : (d_split, H * d1)              hb0p: (1, H * d1)   (per-head concat on out axis)
      hwl   : (H, d_in_l, d_out_l)           hbl : (H, 1, d_out_l)
      o_ref : (TILE_B, H * d_out_last)       lane-dense packed head outputs
    """
    x_ref = refs[0]
    o_ref = refs[-1]
    sp = refs[1:1 + 2 * n_shared]
    hw0_ref = refs[1 + 2 * n_shared]
    hb0_ref = refs[2 + 2 * n_shared]
    hp = refs[3 + 2 * n_shared:-1]

    act_dtype = x_ref.dtype
    h = x_ref[...]

    # Shared backbone (ReLU after every shared layer by construction:
    # split_idx < len(layer_shapes)-1 means no shared layer is the final linear).
    for l in range(n_shared):
        w = sp[2 * l][...]                         # (d_in_l, d_out_l)
        b = sp[2 * l + 1][...]                     # (1, d_out_l)
        z = jnp.dot(h, w, preferred_element_type=jnp.float32)
        z = z + b.astype(jnp.float32)
        if shared_relu[l]:
            z = jnp.maximum(z, 0.0)
        h = z.astype(act_dtype)

    # First head layer for ALL heads in one wide matmul (weights pre-concatenated
    # along the output axis in the wrapper).
    z = jnp.dot(h, hw0_ref[...], preferred_element_type=jnp.float32)
    z = z + hb0_ref[...].astype(jnp.float32)
    if head_relu[0]:
        z = jnp.maximum(z, 0.0)
    y_all = z.astype(act_dtype)                    # (TILE_B, H * d1)

    if n_extra == 0:
        # Single-layer heads: packed result is already the lane-dense output.
        o_ref[...] = y_all.astype(o_ref.dtype)
    else:
        # Remaining head layers are per-head (activations diverge after layer 0).
        d_out_last = o_ref.shape[-1] // num_heads
        for hd in range(num_heads):
            y = y_all[:, hd * d_head0_out:(hd + 1) * d_head0_out]
            for l in range(n_extra):
                w = hp[2 * l][hd]                  # (d_in_l, d_out_l)
                b = hp[2 * l + 1][hd]              # (1, d_out_l)
                z = jnp.dot(y, w, preferred_element_type=jnp.float32)
                z = z + b.astype(jnp.float32)
                if head_relu[l + 1]:
                    z = jnp.maximum(z, 0.0)
                y = z.astype(act_dtype)
            o_ref[:, hd * d_out_last:(hd + 1) * d_out_last] = y.astype(o_ref.dtype)


# ------------------------------------------------------------------
# Tile-size selection (VMEM budget; conservative enough for v7x's 64 MiB)
# ------------------------------------------------------------------
def _choose_tile_b(batch, layer_shapes, split_idx, num_heads, itemsize,
                   vmem_budget_bytes=40 * 1024 * 1024):
    widths = list(layer_shapes)
    # Resident parameter bytes (x2 allowance for Pallas buffering).
    param_bytes = 0
    for i in range(split_idx):
        param_bytes += (widths[i] * widths[i + 1] + widths[i + 1]) * itemsize
    for j in range(split_idx, len(widths) - 1):
        param_bytes += num_heads * (widths[j] * widths[j + 1] + widths[j + 1]) * itemsize
    param_bytes *= 2

    out_width = num_heads * widths[-1]
    head_widths = [num_heads * w for w in widths[split_idx + 1:]]
    # Per batch-row bytes: double-buffered x/out tiles + f32 intermediates.
    per_row = (2 * (widths[0] + out_width) * itemsize
               + 4 * 4 * max(widths + head_widths + [out_width]))

    avail = max(vmem_budget_bytes - param_bytes, per_row * 8)
    tile = int(min(avail // per_row, 1024, max(batch, 1)))
    if tile >= batch:
        return batch                      # single tile covers the whole batch
    if tile >= 128:
        tile = (tile // 128) * 128        # MXU-friendly M when large
    return max(8, (tile // 8) * 8)        # sublane-aligned otherwise


# ------------------------------------------------------------------
# Forward wrapper (single pallas_call)
# ------------------------------------------------------------------
def variable_backbone_forward(x, params, layer_shapes, split_idx, num_heads):
    """Returns the packed, lane-dense output of shape (batch, num_heads * d_out).

    Columns [h*d_out:(h+1)*d_out] are head h's output; use split_head_outputs()
    to recover the PyTorch-style list of per-head tensors.
    """
    batch, d_in = x.shape
    shared_w, shared_b = params["shared_w"], params["shared_b"]
    head_w, head_b = params["head_w"], params["head_b"]
    n_shared = len(shared_w)
    n_head_layers = len(head_w)            # >= 1 (split_idx < len(layer_shapes)-1)
    n_extra = n_head_layers - 1
    d_out_last = layer_shapes[-1]
    out_width = num_heads * d_out_last

    # ReLU placement (matches the PyTorch module):
    #  - shared layers: always followed by ReLU (split_idx < len-1 guarantees it)
    #  - head layers: ReLU after every layer except the last overall linear
    shared_relu = tuple(True for _ in range(n_shared))
    head_relu = tuple(j != len(layer_shapes) - 2
                      for j in range(split_idx, len(layer_shapes) - 1))

    # Pre-concatenate the first head layer across heads (out-axis concat):
    #   (H, d_split, d1) -> (d_split, H*d1),   (H, 1, d1) -> (1, H*d1)
    d_split = layer_shapes[split_idx]
    d1 = layer_shapes[split_idx + 1]
    hw0_packed = jnp.transpose(head_w[0], (1, 0, 2)).reshape(d_split, num_heads * d1)
    hb0_packed = jnp.transpose(head_b[0], (1, 0, 2)).reshape(1, num_heads * d1)

    itemsize = jnp.dtype(x.dtype).itemsize
    tile_b = _choose_tile_b(batch, layer_shapes, split_idx, num_heads, itemsize)
    grid = (pl.cdiv(batch, tile_b),)

    # Input tile streams over the batch axis; all parameters stay resident
    # (constant block index -> no re-fetch across grid steps).
    in_specs = [pl.BlockSpec((tile_b, d_in), lambda i: (i, 0))]
    args = [x]
    for w, b in zip(shared_w, shared_b):
        in_specs.append(pl.BlockSpec(w.shape, lambda i: (0, 0)))
        in_specs.append(pl.BlockSpec(b.shape, lambda i: (0, 0)))
        args += [w, b]
    in_specs.append(pl.BlockSpec(hw0_packed.shape, lambda i: (0, 0)))
    in_specs.append(pl.BlockSpec(hb0_packed.shape, lambda i: (0, 0)))
    args += [hw0_packed, hb0_packed]
    for w, b in zip(head_w[1:], head_b[1:]):
        in_specs.append(pl.BlockSpec(w.shape, lambda i: (0, 0, 0)))
        in_specs.append(pl.BlockSpec(b.shape, lambda i: (0, 0, 0)))
        args += [w, b]
    out_specs = pl.BlockSpec((tile_b, out_width), lambda i: (i, 0))

    # Advisory cost estimate for the XLA scheduler.
    flops_per_row = 0
    for i in range(split_idx):
        flops_per_row += 2 * layer_shapes[i] * layer_shapes[i + 1]
    for j in range(split_idx, len(layer_shapes) - 1):
        flops_per_row += 2 * num_heads * layer_shapes[j] * layer_shapes[j + 1]
    param_bytes = sum(int(w.size) * w.dtype.itemsize + int(b.size) * b.dtype.itemsize
                      for w, b in zip(shared_w + head_w, shared_b + head_b))
    cost = pl.CostEstimate(
        flops=int(flops_per_row) * batch,
        transcendentals=0,
        bytes_accessed=int(x.size) * itemsize + batch * out_width * itemsize + param_bytes,
    )

    kernel = functools.partial(_fused_backbone_kernel, n_shared, n_extra,
                               num_heads, shared_relu, head_relu, d1)
    return pl.pallas_call(
        kernel,
        out_shape=jax.ShapeDtypeStruct((batch, out_width), x.dtype),
        grid=grid,
        in_specs=in_specs,
        out_specs=out_specs,
        compiler_params=pltpu.CompilerParams(
            dimension_semantics=("parallel",),          # megacore-friendly batch axis
            vmem_limit_bytes=48 * 1024 * 1024,          # > default scoped, < v7x physical
        ),
        cost_estimate=cost,
    )(*args)


def split_head_outputs(packed, num_heads):
    """Convenience: (batch, H*d_out) -> list of (batch, d_out), matching PyTorch."""
    d_out = packed.shape[-1] // num_heads
    return [packed[:, h * d_out:(h + 1) * d_out] for h in range(num_heads)]


# ------------------------------------------------------------------
# Parameter init (PyTorch-style uniform(-1/sqrt(fan_in), 1/sqrt(fan_in)))
# ------------------------------------------------------------------
def init_variable_backbone(key, layer_shapes, split_idx, num_heads, dtype=jnp.float32):
    assert split_idx < len(layer_shapes) - 1
    params = {"shared_w": [], "shared_b": [], "head_w": [], "head_b": []}

    for i in range(split_idx):
        fan_in, fan_out = layer_shapes[i], layer_shapes[i + 1]
        bound = 1.0 / (fan_in ** 0.5)
        key, kw, kb = jax.random.split(key, 3)
        params["shared_w"].append(
            jax.random.uniform(kw, (fan_in, fan_out), dtype, -bound, bound))
        params["shared_b"].append(
            jax.random.uniform(kb, (1, fan_out), dtype, -bound, bound))

    for j in range(split_idx, len(layer_shapes) - 1):
        fan_in, fan_out = layer_shapes[j], layer_shapes[j + 1]
        bound = 1.0 / (fan_in ** 0.5)
        key, kw, kb = jax.random.split(key, 3)
        params["head_w"].append(
            jax.random.uniform(kw, (num_heads, fan_in, fan_out), dtype, -bound, bound))
        params["head_b"].append(
            jax.random.uniform(kb, (num_heads, 1, fan_out), dtype, -bound, bound))
    return params


# ------------------------------------------------------------------
# Pure-JAX reference for sanity checking
# ------------------------------------------------------------------
def reference_forward(x, params, layer_shapes, split_idx, num_heads):
    h = x
    for w, b in zip(params["shared_w"], params["shared_b"]):
        h = jnp.maximum(h @ w + b, 0.0)
    outs = []
    last = len(layer_shapes) - 2
    for hd in range(num_heads):
        y = h
        for li, j in enumerate(range(split_idx, len(layer_shapes) - 1)):
            y = y @ params["head_w"][li][hd] + params["head_b"][li][hd]
            if j != last:
                y = jnp.maximum(y, 0.0)
        outs.append(y)
    return outs


def _run_case(key, layer_shapes, split_idx, num_heads, batch):
    key, kx, kp = jax.random.split(key, 3)
    x = jax.random.normal(kx, (batch, layer_shapes[0]), jnp.float32)
    params = init_variable_backbone(kp, layer_shapes, split_idx, num_heads)

    packed = variable_backbone_forward(x, params, layer_shapes, split_idx, num_heads)
    packed = jax.block_until_ready(packed)
    assert packed.shape == (batch, num_heads * layer_shapes[-1]), packed.shape

    outs = split_head_outputs(packed, num_heads)
    refs = reference_forward(x, params, layer_shapes, split_idx, num_heads)
    for o, r in zip(outs, refs):
        assert o.shape == (batch, layer_shapes[-1]), o.shape
        assert jnp.allclose(o, r, atol=1e-4, rtol=1e-4), float(jnp.abs(o - r).max())
    return key


if __name__ == "__main__":
    key = jax.random.PRNGKey(0)

    # Case A: single-layer heads (split after last hidden) -> fully fused head matmul.
    key = _run_case(key, layer_shapes=(16, 32, 32, 8), split_idx=2, num_heads=3, batch=8)

    # Case B: two-layer heads (split after first hidden) -> fused layer 0 + per-head layer 1.
    key = _run_case(key, layer_shapes=(16, 32, 32, 8), split_idx=1, num_heads=2, batch=16)

    print("KERNEL_OK")
</pallas_src>

<mosaic_0001>
module attributes {stable_mosaic.version = 11 : i64} {
  func.func @_fused_backbone_kernel(%arg0: i32, %arg1: memref<8x16xf32, #tpu.memory_space<vmem>>, %arg2: memref<16x32xf32, #tpu.memory_space<vmem>>, %arg3: memref<1x32xf32, #tpu.memory_space<vmem>>, %arg4: memref<32x32xf32, #tpu.memory_space<vmem>>, %arg5: memref<1x32xf32, #tpu.memory_space<vmem>>, %arg6: memref<32x24xf32, #tpu.memory_space<vmem>>, %arg7: memref<1x24xf32, #tpu.memory_space<vmem>>, %arg8: memref<8x24xf32, #tpu.memory_space<vmem>>) attributes {dimension_semantics = [#tpu.dimension_semantics<parallel>], iteration_bounds = array<i64: 1>, scalar_prefetch = 0 : i64, scratch_operands = 0 : i64, tpu.core_type = #tpu.core_type<tc>, window_params = [{transform_indices = @transform_0, window_bounds = array<i64: 8, 16>}, {pipeline_mode = #tpu.pipeline_mode<synchronous>, transform_indices = @transform_1, window_bounds = array<i64: 16, 32>}, {pipeline_mode = #tpu.pipeline_mode<synchronous>, transform_indices = @transform_2, window_bounds = array<i64: 1, 32>}, {pipeline_mode = #tpu.pipeline_mode<synchronous>, transform_indices = @transform_3, window_bounds = array<i64: 32, 32>}, {pipeline_mode = #tpu.pipeline_mode<synchronous>, transform_indices = @transform_4, window_bounds = array<i64: 1, 32>}, {pipeline_mode = #tpu.pipeline_mode<synchronous>, transform_indices = @transform_5, window_bounds = array<i64: 32, 24>}, {pipeline_mode = #tpu.pipeline_mode<synchronous>, transform_indices = @transform_6, window_bounds = array<i64: 1, 24>}, {transform_indices = @transform_7, window_bounds = array<i64: 8, 24>}]} {
    %c0 = arith.constant 0 : index
    %c0_0 = arith.constant 0 : index
    %0 = vector.load %arg1[%c0, %c0_0] : memref<8x16xf32, #tpu.memory_space<vmem>>, vector<8x16xf32>
    %c0_1 = arith.constant 0 : index
    %c0_2 = arith.constant 0 : index
    %1 = vector.load %arg2[%c0_1, %c0_2] : memref<16x32xf32, #tpu.memory_space<vmem>>, vector<16x32xf32>
    %c0_3 = arith.constant 0 : index
    %c0_4 = arith.constant 0 : index
    %2 = vector.load %arg3[%c0_3, %c0_4] : memref<1x32xf32, #tpu.memory_space<vmem>>, vector<1x32xf32>
    %cst = arith.constant dense<0.000000e+00> : vector<8x32xf32>
    %3 = tpu.matmul %0, %1, %cst {dimension_numbers = #tpu.dot_dimension_numbers<[1], [0], [0], [1], [0, 0, 1, 1], [], []>} : vector<8x16xf32>, vector<16x32xf32>, vector<8x32xf32> -> vector<8x32xf32>
    %4 = vector.broadcast %2 : vector<1x32xf32> to vector<8x32xf32>
    %5 = arith.addf %3, %4 : vector<8x32xf32>
    %cst_5 = arith.constant 0.000000e+00 : f32
    %6 = vector.broadcast %cst_5 : f32 to vector<8x32xf32>
    %7 = arith.maximumf %5, %6 : vector<8x32xf32>
    %c0_6 = arith.constant 0 : index
    %c0_7 = arith.constant 0 : index
    %8 = vector.load %arg4[%c0_6, %c0_7] : memref<32x32xf32, #tpu.memory_space<vmem>>, vector<32x32xf32>
    %c0_8 = arith.constant 0 : index
    %c0_9 = arith.constant 0 : index
    %9 = vector.load %arg5[%c0_8, %c0_9] : memref<1x32xf32, #tpu.memory_space<vmem>>, vector<1x32xf32>
    %cst_10 = arith.constant dense<0.000000e+00> : vector<8x32xf32>
    %10 = tpu.matmul %7, %8, %cst_10 {dimension_numbers = #tpu.dot_dimension_numbers<[1], [0], [0], [1], [0, 0, 1, 1], [], []>} : vector<8x32xf32>, vector<32x32xf32>, vector<8x32xf32> -> vector<8x32xf32>
    %11 = vector.broadcast %9 : vector<1x32xf32> to vector<8x32xf32>
    %12 = arith.addf %10, %11 : vector<8x32xf32>
    %cst_11 = arith.constant 0.000000e+00 : f32
    %13 = vector.broadcast %cst_11 : f32 to vector<8x32xf32>
    %14 = arith.maximumf %12, %13 : vector<8x32xf32>
    %c0_12 = arith.constant 0 : index
    %c0_13 = arith.constant 0 : index
    %15 = vector.load %arg6[%c0_12, %c0_13] : memref<32x24xf32, #tpu.memory_space<vmem>>, vector<32x24xf32>
    %cst_14 = arith.constant dense<0.000000e+00> : vector<8x24xf32>
    %16 = tpu.matmul %14, %15, %cst_14 {dimension_numbers = #tpu.dot_dimension_numbers<[1], [0], [0], [1], [0, 0, 1, 1], [], []>} : vector<8x32xf32>, vector<32x24xf32>, vector<8x24xf32> -> vector<8x24xf32>
    %c0_15 = arith.constant 0 : index
    %c0_16 = arith.constant 0 : index
    %17 = vector.load %arg7[%c0_15, %c0_16] : memref<1x24xf32, #tpu.memory_space<vmem>>, vector<1x24xf32>
    %18 = vector.broadcast %17 : vector<1x24xf32> to vector<8x24xf32>
    %19 = arith.addf %16, %18 : vector<8x24xf32>
    %c0_17 = arith.constant 0 : index
    %c0_18 = arith.constant 0 : index
    %20 = vector.load %arg8[%c0_17, %c0_18] : memref<8x24xf32, #tpu.memory_space<vmem>>, vector<8x24xf32>
    tpu.vector_store %arg8[%c0_17, %c0_18], %19 {strides = array<i32>} : memref<8x24xf32, #tpu.memory_space<vmem>>, vector<8x24xf32>,
    return
  }
  func.func @transform_0(%arg0: i32) -> (i32, i32) {
    %c0_i32 = arith.constant 0 : i32
    %c0_i32_0 = arith.constant 0 : i32
    return %arg0, %c0_i32 : i32, i32
  }
  func.func @transform_1(%arg0: i32) -> (i32, i32) {
    %c0_i32 = arith.constant 0 : i32
    %c0_i32_0 = arith.constant 0 : i32
    %c0_i32_1 = arith.constant 0 : i32
    return %c0_i32, %c0_i32_0 : i32, i32
  }
  func.func @transform_2(%arg0: i32) -> (i32, i32) {
    %c0_i32 = arith.constant 0 : i32
    %c0_i32_0 = arith.constant 0 : i32
    %c0_i32_1 = arith.constant 0 : i32
    return %c0_i32, %c0_i32_0 : i32, i32
  }
  func.func @transform_3(%arg0: i32) -> (i32, i32) {
    %c0_i32 = arith.constant 0 : i32
    %c0_i32_0 = arith.constant 0 : i32
    %c0_i32_1 = arith.constant 0 : i32
    return %c0_i32, %c0_i32_0 : i32, i32
  }
  func.func @transform_4(%arg0: i32) -> (i32, i32) {
    %c0_i32 = arith.constant 0 : i32
    %c0_i32_0 = arith.constant 0 : i32
    %c0_i32_1 = arith.constant 0 : i32
    return %c0_i32, %c0_i32_0 : i32, i32
  }
  func.func @transform_5(%arg0: i32) -> (i32, i32) {
    %c0_i32 = arith.constant 0 : i32
    %c0_i32_0 = arith.constant 0 : i32
    %c0_i32_1 = arith.constant 0 : i32
    return %c0_i32, %c0_i32_0 : i32, i32
  }
  func.func @transform_6(%arg0: i32) -> (i32, i32) {
    %c0_i32 = arith.constant 0 : i32
    %c0_i32_0 = arith.constant 0 : i32
    %c0_i32_1 = arith.constant 0 : i32
    return %c0_i32, %c0_i32_0 : i32, i32
  }
  func.func @transform_7(%arg0: i32) -> (i32, i32) {
    %c0_i32 = arith.constant 0 : i32
    %c0_i32_0 = arith.constant 0 : i32
    return %arg0, %c0_i32 : i32, i32
  }
}

</mosaic_0001>

<llo_original>
// kernel: tpu_custom_call.1
$region0: #{tpu_custom_call.1}
  #allocation0 [shape = 'u32[]', space=smem, size = 0x4, offset = 0x4, fixed_abs, tag = 'smem constant byte address 0x4 - core index']
  #allocation1 [shape = 'u32[144,128]{1,0:T(1,128)}', space=vmem, size = 0x12000, scoped, tag = 'internal scratch']
  %s0 = inlined_call_operand.vmem [shape: f32[8,16], index: 0, kind: input, shape index: {}]
  %s1 = inlined_call_operand.vmem [shape: f32[16,32], index: 1, kind: input, shape index: {}]
  %s2 = inlined_call_operand.vmem [shape: f32[1,32], index: 2, kind: input, shape index: {}]
  %s3 = inlined_call_operand.vmem [shape: f32[32,32], index: 3, kind: input, shape index: {}]
  %s4 = inlined_call_operand.vmem [shape: f32[1,32], index: 4, kind: input, shape index: {}]
  %s5 = inlined_call_operand.vmem [shape: f32[32,24], index: 5, kind: input, shape index: {}]
  %s6 = inlined_call_operand.vmem [shape: f32[1,24], index: 6, kind: input, shape index: {}]
  %s7 = inlined_call_operand.hbm [shape: f32[8,24], index: 7, kind: output, shape index: {}]
  %s8 = sld [smem:[#allocation0]]
  $region38: #{tpu_custom_call.1} parent=0
    _
  %s10 = ssub.s32 1, %s8
  %s11 = scalar_select 0, %s10, %s8
  $region1: #{tpu_custom_call.1} parent=0
    #allocation2 [shape = 'u8[4096]{0}', space=vmem, size = 0x1000, scoped, tag = 'output window, operand 0, single buffered']
    #allocation3 [shape = 's32[1]{0}', space=sflag, size = 0x4, scoped, tag = 'scoped memory for tpu_custom_call.1']
    %12 = vsyncpa [#allocation3], 0
    // Predicated region
    $region2: #{tpu_custom_call.1} parent=1 // pred_check
      _
    $region3: #{tpu_custom_call.1} parent=1 // pred_check_branch
      %14 = sbr.rel (0) target = $region5
    $region4: #{tpu_custom_call.1} parent=1 // pred_region
      _
    $region5: #{tpu_custom_call.1} parent=1 // pred_fallthru
      _
    // Predicated region
    $region6: #{tpu_custom_call.1} parent=1 // pred_check
      _
    $region7: #{tpu_custom_call.1} parent=1 // pred_check_branch
      %16 = sbr.rel (0) target = $region9
    $region8: #{tpu_custom_call.1} parent=1 // pred_region
      _
    $region9: #{tpu_custom_call.1} parent=1 // pred_fallthru
      _
    // Predicated region
    $region10: #{tpu_custom_call.1} parent=1 // pred_check
      _
    $region11: #{tpu_custom_call.1} parent=1 // pred_check_branch
      %18 = sbr.rel (0) target = $region13
    $region12: #{tpu_custom_call.1} parent=1 // pred_region
      _
    $region13: #{tpu_custom_call.1} parent=1 // pred_fallthru
      _
    // Predicated region
    $region14: #{tpu_custom_call.1} parent=1 // pred_check
      _
    $region15: #{tpu_custom_call.1} parent=1 // pred_check_branch
      %20 = sbr.rel (0) target = $region17
    $region16: #{tpu_custom_call.1} parent=1 // pred_region
      _
    $region17: #{tpu_custom_call.1} parent=1 // pred_fallthru
      _
    // Predicated region
    $region18: #{tpu_custom_call.1} parent=1 // pred_check
      _
    $region19: #{tpu_custom_call.1} parent=1 // pred_check_branch
      %22 = sbr.rel (0) target = $region21
    $region20: #{tpu_custom_call.1} parent=1 // pred_region
      _
    $region21: #{tpu_custom_call.1} parent=1 // pred_fallthru
      _
    // Predicated region
    $region22: #{tpu_custom_call.1} parent=1 // pred_check
      _
    $region23: #{tpu_custom_call.1} parent=1 // pred_check_branch
      %24 = sbr.rel (0) target = $region25
    $region24: #{tpu_custom_call.1} parent=1 // pred_region
      _
    $region25: #{tpu_custom_call.1} parent=1 // pred_fallthru
      _
    // Predicated region
    $region26: #{tpu_custom_call.1} parent=1 // pred_check
      _
    $region27: #{tpu_custom_call.1} parent=1 // pred_check_branch
      %26 = sbr.rel (0) target = $region29
    $region28: #{tpu_custom_call.1} parent=1 // pred_region
      _
    $region29: #{tpu_custom_call.1} parent=1 // pred_fallthru
      _
    %v27 = vld [vmem:[%s0] sm:$0xff]
    %v28 = vld [vmem:[%s1] sm:$0xff]
    %v29 = vld [vmem:[%s1 + $0x8] sm:$0xff]
    %v30 = vld [vmem:[%s2] sm:$0x1]
    %v32 = vlaneseq
    %v33 = vshrl.u32 %v32, 7
    %v34 = vsub.s32 0, %v33
    %v35 = vrot.slane %v30, %v34
    %vm37 = vcmask 130048
    %v39 = vsel %vm37, %v27, 0
    %41 = vmatprep.subr.mxu0 0.0
    %42 = vmatpush1.msra.mxu0 %v28
    %43 = vmatprep.subr.mxu0 0.0
    %44 = vmatpush1.msra.mxu0 %v29
    %45 = vmatprep.subr.mxu0 0.0
    %46 = vmatpush1.msra.mxu0 0.0
    %47 = vmatprep.subr.mxu0 0.0
    %48 = vmatpush1.msra.mxu0 0.0
    %49 = vmatprep.subr.mxu0 0.0
    %50 = vmatpush1.msra.mxu0 0.0
    %51 = vmatprep.subr.mxu0 0.0
    %52 = vmatpush1.msra.mxu0 0.0
    %53 = vmatprep.subr.mxu0 0.0
    %54 = vmatpush1.msra.mxu0 0.0
    %55 = vmatprep.subr.mxu0 0.0
    %56 = vmatpush1.msra.mxu0 0.0
    %57 = vmatprep.subr.mxu0 0.0
    %58 = vmatpush1.msra.mxu0 0.0
    %59 = vmatprep.subr.mxu0 0.0
    %60 = vmatpush1.msra.mxu0 0.0
    %61 = vmatprep.subr.mxu0 0.0
    %62 = vmatpush1.msra.mxu0 0.0
    %63 = vmatprep.subr.mxu0 0.0
    %64 = vmatpush1.msra.mxu0 0.0
    %65 = vmatprep.subr.mxu0 0.0
    %66 = vmatpush1.msra.mxu0 0.0
    %67 = vmatprep.subr.mxu0 0.0
    %68 = vmatpush1.msra.mxu0 0.0
    %69 = vmatprep.subr.mxu0 0.0
    %70 = vmatpush1.msra.mxu0 0.0
    %71 = vmatprep.subr.mxu0 0.0
    %72 = vmatpush1.msra.mxu0 0.0
    %73 = vmatprep.subr.mxu0 0.0
    %74 = vmatpush1.msra.mxu0 0.0
    %75 = vmatprep.subr.mxu0 0.0
    %76 = vmatpush1.msra.mxu0 0.0
    %77 = vmatprep.subr.mxu0 0.0
    %78 = vmatpush1.msra.mxu0 0.0
    %79 = vmatprep.subr.mxu0 0.0
    %80 = vmatpush1.msra.mxu0 0.0
    %81 = vmatprep.subr.mxu0 0.0
    %82 = vmatpush1.msra.mxu0 0.0
    %83 = vmatprep.subr.mxu0 0.0
    %84 = vmatpush1.msra.mxu0 0.0
    %85 = vmatprep.subr.mxu0 0.0
    %86 = vmatpush1.msra.mxu0 0.0
    %87 = vmatprep.subr.mxu0 0.0
    %88 = vmatpush1.msra.mxu0 0.0
    %89 = vmatprep.subr.mxu0 0.0
    %90 = vmatpush1.msra.mxu0 0.0
    %91 = vmatprep.subr.mxu0 0.0
    %92 = vmatpush1.msra.mxu0 0.0
    %93 = vmatprep.subr.mxu0 0.0
    %94 = vmatpush1.msra.mxu0 0.0
    %95 = vmatprep.subr.mxu0 0.0
    %96 = vmatpush1.msra.mxu0 0.0
    %97 = vmatprep.subr.mxu0 0.0
    %98 = vmatpush1.msra.mxu0 0.0
    %99 = vmatprep.subr.mxu0 0.0
    %100 = vmatpush1.msra.mxu0 0.0
    %101 = vmatprep.subr.mxu0 0.0
    %102 = vmatpush1.msra.mxu0 0.0
    %103 = vmatprep.subr.mxu0 0.0
    %104 = vmatpush1.msra.mxu0 0.0
    %105 = vmatprep.mubr.f32.mxu0 0.0
    %106 = vmatmul.mubr.f32.gmra.mrb[0].mxu0 %v39
    %v107 = vpop.f32.mrb[0].mxu0
    %v108 = vadd.f32 %v35, %v107
    %v109 = vpop.f32.mrb[0].mxu0
    %110 = vdwg.mxu0
    %v111 = vmax.f32 %v108, 0.0
    %v112 = vld [vmem:[%s3] sm:$0xff]
    %v113 = vld [vmem:[%s3 + $0x8] sm:$0xff]
    %v114 = vld [vmem:[%s3 + $0x10] sm:$0xff]
    %v115 = vld [vmem:[%s3 + $0x18] sm:$0xff]
    %v116 = vld [vmem:[%s4] sm:$0x1]
    %v118 = vlaneseq
    %v119 = vshrl.u32 %v118, 7
    %v120 = vsub.s32 0, %v119
    %v121 = vrot.slane %v116, %v120
    %vm123 = vcmask 261120
    %v125 = vsel %vm123, %v111, 0
    %127 = vmatprep.subr.mxu0 0.0
    %128 = vmatpush1.msra.mxu0 %v112
    %129 = vmatprep.subr.mxu0 0.0
    %130 = vmatpush1.msra.mxu0 %v113
    %131 = vmatprep.subr.mxu0 0.0
    %132 = vmatpush1.msra.mxu0 %v114
    %133 = vmatprep.subr.mxu0 0.0
    %134 = vmatpush1.msra.mxu0 %v115
    %135 = vmatprep.subr.mxu0 0.0
    %136 = vmatpush1.msra.mxu0 0.0
    %137 = vmatprep.subr.mxu0 0.0
    %138 = vmatpush1.msra.mxu0 0.0
    %139 = vmatprep.subr.mxu0 0.0
    %140 = vmatpush1.msra.mxu0 0.0
    %141 = vmatprep.subr.mxu0 0.0
    %142 = vmatpush1.msra.mxu0 0.0
    %143 = vmatprep.subr.mxu0 0.0
    %144 = vmatpush1.msra.mxu0 0.0
    %145 = vmatprep.subr.mxu0 0.0
    %146 = vmatpush1.msra.mxu0 0.0
    %147 = vmatprep.subr.mxu0 0.0
    %148 = vmatpush1.msra.mxu0 0.0
    %149 = vmatprep.subr.mxu0 0.0
    %150 = vmatpush1.msra.mxu0 0.0
    %151 = vmatprep.subr.mxu0 0.0
    %152 = vmatpush1.msra.mxu0 0.0
    %153 = vmatprep.subr.mxu0 0.0
    %154 = vmatpush1.msra.mxu0 0.0
    %155 = vmatprep.subr.mxu0 0.0
    %156 = vmatpush1.msra.mxu0 0.0
    %157 = vmatprep.subr.mxu0 0.0
    %158 = vmatpush1.msra.mxu0 0.0
    %159 = vmatprep.subr.mxu0 0.0
    %160 = vmatpush1.msra.mxu0 0.0
    %161 = vmatprep.subr.mxu0 0.0
    %162 = vmatpush1.msra.mxu0 0.0
    %163 = vmatprep.subr.mxu0 0.0
    %164 = vmatpush1.msra.mxu0 0.0
    %165 = vmatprep.subr.mxu0 0.0
    %166 = vmatpush1.msra.mxu0 0.0
    %167 = vmatprep.subr.mxu0 0.0
    %168 = vmatpush1.msra.mxu0 0.0
    %169 = vmatprep.subr.mxu0 0.0
    %170 = vmatpush1.msra.mxu0 0.0
    %171 = vmatprep.subr.mxu0 0.0
    %172 = vmatpush1.msra.mxu0 0.0
    %173 = vmatprep.subr.mxu0 0.0
    %174 = vmatpush1.msra.mxu0 0.0
    %175 = vmatprep.subr.mxu0 0.0
    %176 = vmatpush1.msra.mxu0 0.0
    %177 = vmatprep.subr.mxu0 0.0
    %178 = vmatpush1.msra.mxu0 0.0
    %179 = vmatprep.subr.mxu0 0.0
    %180 = vmatpush1.msra.mxu0 0.0
    %181 = vmatprep.subr.mxu0 0.0
    %182 = vmatpush1.msra.mxu0 0.0
    %183 = vmatprep.subr.mxu0 0.0
    %184 = vmatpush1.msra.mxu0 0.0
    %185 = vmatprep.subr.mxu0 0.0
    %186 = vmatpush1.msra.mxu0 0.0
    %187 = vmatprep.subr.mxu0 0.0
    %188 = vmatpush1.msra.mxu0 0.0
    %189 = vmatprep.subr.mxu0 0.0
    %190 = vmatpush1.msra.mxu0 0.0
    %191 = vmatprep.mubr.f32.mxu0 0.0
    %192 = vmatmul.mubr.f32.gmra.mrb[0].mxu0 %v125
    %v193 = vpop.f32.mrb[0].mxu0
    %v194 = vadd.f32 %v121, %v193
    %v195 = vpop.f32.mrb[0].mxu0
    %196 = vdwg.mxu0
    %v197 = vmax.f32 %v194, 0.0
    %v198 = vld [vmem:[%s5] sm:$0xff]
    %v199 = vld [vmem:[%s5 + $0x8] sm:$0xff]
    %v200 = vld [vmem:[%s5 + $0x10] sm:$0xff]
    %v201 = vld [vmem:[%s5 + $0x18] sm:$0xff]
    %v202 = vld [vmem:[%s6] sm:$0x1]
    %v204 = vlaneseq
    %v205 = vshrl.u32 %v204, 7
    %v206 = vsub.s32 0, %v205
    %v207 = vrot.slane %v202, %v206
    %v210 = vsel %vm123, %v197, 0
    %212 = vmatprep.subr.mxu0 0.0
    %213 = vmatpush1.msra.mxu0 %v198
    %214 = vmatprep.subr.mxu0 0.0
    %215 = vmatpush1.msra.mxu0 %v199
    %216 = vmatprep.subr.mxu0 0.0
    %217 = vmatpush1.msra.mxu0 %v200
    %218 = vmatprep.subr.mxu0 0.0
    %219 = vmatpush1.msra.mxu0 %v201
    %220 = vmatprep.subr.mxu0 0.0
    %221 = vmatpush1.msra.mxu0 0.0
    %222 = vmatprep.subr.mxu0 0.0
    %223 = vmatpush1.msra.mxu0 0.0
    %224 = vmatprep.subr.mxu0 0.0
    %225 = vmatpush1.msra.mxu0 0.0
    %226 = vmatprep.subr.mxu0 0.0
    %227 = vmatpush1.msra.mxu0 0.0
    %228 = vmatprep.subr.mxu0 0.0
    %229 = vmatpush1.msra.mxu0 0.0
    %230 = vmatprep.subr.mxu0 0.0
    %231 = vmatpush1.msra.mxu0 0.0
    %232 = vmatprep.subr.mxu0 0.0
    %233 = vmatpush1.msra.mxu0 0.0
    %234 = vmatprep.subr.mxu0 0.0
    %235 = vmatpush1.msra.mxu0 0.0
    %236 = vmatprep.subr.mxu0 0.0
    %237 = vmatpush1.msra.mxu0 0.0
    %238 = vmatprep.subr.mxu0 0.0
    %239 = vmatpush1.msra.mxu0 0.0
    %240 = vmatprep.subr.mxu0 0.0
    %241 = vmatpush1.msra.mxu0 0.0
    %242 = vmatprep.subr.mxu0 0.0
    %243 = vmatpush1.msra.mxu0 0.0
    %244 = vmatprep.subr.mxu0 0.0
    %245 = vmatpush1.msra.mxu0 0.0
    %246 = vmatprep.subr.mxu0 0.0
    %247 = vmatpush1.msra.mxu0 0.0
    %248 = vmatprep.subr.mxu0 0.0
    %249 = vmatpush1.msra.mxu0 0.0
    %250 = vmatprep.subr.mxu0 0.0
    %251 = vmatpush1.msra.mxu0 0.0
    %252 = vmatprep.subr.mxu0 0.0
    %253 = vmatpush1.msra.mxu0 0.0
    %254 = vmatprep.subr.mxu0 0.0
    %255 = vmatpush1.msra.mxu0 0.0
    %256 = vmatprep.subr.mxu0 0.0
    %257 = vmatpush1.msra.mxu0 0.0
    %258 = vmatprep.subr.mxu0 0.0
    %259 = vmatpush1.msra.mxu0 0.0
    %260 = vmatprep.subr.mxu0 0.0
    %261 = vmatpush1.msra.mxu0 0.0
    %262 = vmatprep.subr.mxu0 0.0
    %263 = vmatpush1.msra.mxu0 0.0
    %264 = vmatprep.subr.mxu0 0.0
    %265 = vmatpush1.msra.mxu0 0.0
    %266 = vmatprep.subr.mxu0 0.0
    %267 = vmatpush1.msra.mxu0 0.0
    %268 = vmatprep.subr.mxu0 0.0
    %269 = vmatpush1.msra.mxu0 0.0
    %270 = vmatprep.subr.mxu0 0.0
    %271 = vmatpush1.msra.mxu0 0.0
    %272 = vmatprep.subr.mxu0 0.0
    %273 = vmatpush1.msra.mxu0 0.0
    %274 = vmatprep.subr.mxu0 0.0
    %275 = vmatpush1.msra.mxu0 0.0
    %276 = vmatprep.mubr.f32.mxu0 0.0
    %277 = vmatmul.mubr.f32.gmra.mrb[0].mxu0 %v210
    %v278 = vpop.f32.mrb[0].mxu0
    %v279 = vadd.f32 %v207, %v278
    %v280 = vpop.f32.mrb[0].mxu0
    %281 = vdwg.mxu0
    %vm282 = vcmask 195584
    %283 = vst.msk [vmem:[#allocation2] sm:$0xff] %vm282, %v279
    // Predicated region
    $region30: #{tpu_custom_call.1} parent=1 // pred_check
      _
    $region31: #{tpu_custom_call.1} parent=1 // pred_check_branch
      %285 = sbr.rel (0) target = $region33
    $region32: #{tpu_custom_call.1} parent=1 // pred_region
      %s287 = ssub.s32 128, 128
      %288 = vsyncadd [#allocation3], %s287
      %s290 = sshll.u32 [#allocation2], 4
      %s291 = int_to_ptr.vmem [resolvable:$true] %s290
      %293 = dma.vmem_to_hbm [thread:$0]  %s291, 128, %s7, [#allocation3]
    $region33: #{tpu_custom_call.1} parent=1 // pred_fallthru
      _
    // Predicated region
    $region34: #{tpu_custom_call.1} parent=1 // pred_check
      _
    $region35: #{tpu_custom_call.1} parent=1 // pred_check_branch
      %295 = sbr.rel (0) target = $region37
    $region36: #{tpu_custom_call.1} parent=1 // pred_region
      %296 = dma.done [#allocation3], 128
    $region37: #{tpu_custom_call.1} parent=1 // pred_fallthru
      _
    %297 = vsyncpa [#allocation3], 1

</llo_original>
